<compile_context>
chip_gen: v7x
topology: tpu7x:2x2x1
jax: 0.10.0
libtpu: 0.0.40
codegen_flags: <defaults>
</compile_context>

<pallas_src>
import functools

import jax
import jax.numpy as jnp
from jax.experimental import pallas as pl
from jax.experimental.pallas import tpu as pltpu

_LANE = 128
_SUBLANE = 8
_ROW_TILE_GRAN = 32                     # safe sublane granularity for f32/bf16/int8
_DEFAULT_BLOCK_BYTES = 2 * 1024 * 1024  # ~2 MiB (f32) per array per VMEM block


def _round_up(n, m):
    return ((n + m - 1) // m) * m


def _mosaic_params(total_block_bytes, dims):
    # Explicit scoped-VMEM limit: 2x (double buffering) + headroom, >= 32 MiB.
    vmem = max(2 * int(total_block_bytes) + (8 << 20), 32 << 20)
    vmem = min(vmem, 100 << 20)
    return pltpu.CompilerParams(dimension_semantics=dims, vmem_limit_bytes=vmem)


def _solve_scale_shift(a00, a01, a11, b0, b1):
    """Closed-form 2x2 normal-equation solve; elementwise on any shape."""
    det = a00 * a11 - a01 * a01
    valid = det > 0.0
    inv = 1.0 / jnp.where(valid, det, 1.0)
    scale = jnp.where(valid, (a11 * b0 - a01 * b1) * inv, 1.0)
    shift = jnp.where(valid, (a00 * b1 - a01 * b0) * inv, 0.0)
    return scale, shift


def _sum_rows(x):
    """Sum a (Bt, R, 128) tile over its (sublane, lane) axes -> (Bt, 1, 1)."""
    return jnp.sum(jnp.sum(x, axis=-2, keepdims=True), axis=-1, keepdims=True)


# --------------------------------------------------------------------------
# Fused single-pass kernels (small per-batch slabs; several rows per block).
# --------------------------------------------------------------------------
def _fused_masked_kernel(p_ref, t_ref, m_ref, o_ref):
    p = p_ref[...].astype(jnp.float32)      # (Bt, R, 128)
    t = t_ref[...].astype(jnp.float32)
    m = m_ref[...].astype(jnp.float32)      # int8 {0,1} stream -> f32 in-vreg
    mp = m * p
    a00 = _sum_rows(mp * p)
    a01 = _sum_rows(mp)
    a11 = _sum_rows(m)
    b0 = _sum_rows(mp * t)
    b1 = _sum_rows(m * t)
    scale, shift = _solve_scale_shift(a00, a01, a11, b0, b1)   # (Bt, 1, 1)
    o_ref[...] = (scale * p + shift).astype(o_ref.dtype)


def _fused_nomask_kernel(p_ref, t_ref, o_ref, *, n_valid):
    # No mask stream: the masked count is the static constant n_valid
    # (zero padding contributes nothing to the other sums).
    p = p_ref[...].astype(jnp.float32)
    t = t_ref[...].astype(jnp.float32)
    a00 = _sum_rows(p * p)
    a01 = _sum_rows(p)
    a11 = jnp.float32(n_valid)
    b0 = _sum_rows(p * t)
    b1 = _sum_rows(t)
    scale, shift = _solve_scale_shift(a00, a01, a11, b0, b1)
    o_ref[...] = (scale * p + shift).astype(o_ref.dtype)


def _align_fused(p3, t3, m3, n_valid, block_bytes):
    B, rows, _ = p3.shape
    row_bytes = rows * _LANE * 4
    bt = int(max(1, min(B, block_bytes // row_bytes)))   # batch rows per block
    b_pad = _round_up(B, bt)
    if b_pad != B:
        widths = ((0, b_pad - B), (0, 0), (0, 0))
        p3 = jnp.pad(p3, widths)
        t3 = jnp.pad(t3, widths)
        if m3 is not None:
            m3 = jnp.pad(m3, widths)   # padded rows: det==0 -> identity, discarded

    spec = pl.BlockSpec((bt, rows, _LANE), lambda i: (i, 0, 0))
    itemsize = jnp.dtype(p3.dtype).itemsize
    blk = bt * rows * _LANE
    total_block_bytes = blk * (3 * itemsize + (1 if m3 is not None else 0))

    if m3 is not None:
        kernel = _fused_masked_kernel
        in_specs = [spec, spec, spec]
        operands = (p3, t3, m3)
    else:
        kernel = functools.partial(_fused_nomask_kernel, n_valid=n_valid)
        in_specs = [spec, spec]
        operands = (p3, t3)

    out = pl.pallas_call(
        kernel,
        out_shape=jax.ShapeDtypeStruct((b_pad, rows, _LANE), p3.dtype),
        grid_spec=pltpu.PrefetchScalarGridSpec(
            num_scalar_prefetch=0,
            grid=(b_pad // bt,),
            in_specs=in_specs,
            out_specs=spec,
        ),
        compiler_params=_mosaic_params(total_block_bytes, ("parallel",)),
    )(*operands)
    return out[:B] if b_pad != B else out


# --------------------------------------------------------------------------
# Tiled two-pass path (large per-batch slabs; VMEM-safe on v7x).
# --------------------------------------------------------------------------
def _reduce_masked_kernel(p_ref, t_ref, m_ref, scale_ref, shift_ref,
                          a00_acc, a01_acc, a11_acc, b0_acc, b1_acc):
    i = pl.program_id(1)

    @pl.when(i == 0)
    def _init():
        a00_acc[...] = jnp.zeros_like(a00_acc)
        a01_acc[...] = jnp.zeros_like(a01_acc)
        a11_acc[...] = jnp.zeros_like(a11_acc)
        b0_acc[...] = jnp.zeros_like(b0_acc)
        b1_acc[...] = jnp.zeros_like(b1_acc)

    p = p_ref[...].astype(jnp.float32)      # (1, Rt, 128)
    t = t_ref[...].astype(jnp.float32)
    m = m_ref[...].astype(jnp.float32)
    mp = m * p
    # Partial-reduce over the sublane axis only; keep the lane axis vectorized.
    a00_acc[...] += jnp.sum(mp * p, axis=1)
    a01_acc[...] += jnp.sum(mp, axis=1)
    a11_acc[...] += jnp.sum(m, axis=1)
    b0_acc[...] += jnp.sum(mp * t, axis=1)
    b1_acc[...] += jnp.sum(m * t, axis=1)

    @pl.when(i == pl.num_programs(1) - 1)
    def _finalize():
        a00 = jnp.sum(a00_acc[...], axis=-1, keepdims=True)   # (1, 1)
        a01 = jnp.sum(a01_acc[...], axis=-1, keepdims=True)
        a11 = jnp.sum(a11_acc[...], axis=-1, keepdims=True)
        b0 = jnp.sum(b0_acc[...], axis=-1, keepdims=True)
        b1 = jnp.sum(b1_acc[...], axis=-1, keepdims=True)
        scale, shift = _solve_scale_shift(a00, a01, a11, b0, b1)
        scale_ref[0] = jnp.broadcast_to(scale, (1, _LANE))
        shift_ref[0] = jnp.broadcast_to(shift, (1, _LANE))


def _reduce_nomask_kernel(p_ref, t_ref, scale_ref, shift_ref,
                          a00_acc, a01_acc, b0_acc, b1_acc, *, n_valid):
    i = pl.program_id(1)

    @pl.when(i == 0)
    def _init():
        a00_acc[...] = jnp.zeros_like(a00_acc)
        a01_acc[...] = jnp.zeros_like(a01_acc)
        b0_acc[...] = jnp.zeros_like(b0_acc)
        b1_acc[...] = jnp.zeros_like(b1_acc)

    p = p_ref[...].astype(jnp.float32)
    t = t_ref[...].astype(jnp.float32)
    a00_acc[...] += jnp.sum(p * p, axis=1)
    a01_acc[...] += jnp.sum(p, axis=1)
    b0_acc[...] += jnp.sum(p * t, axis=1)
    b1_acc[...] += jnp.sum(t, axis=1)

    @pl.when(i == pl.num_programs(1) - 1)
    def _finalize():
        a00 = jnp.sum(a00_acc[...], axis=-1, keepdims=True)
        a01 = jnp.sum(a01_acc[...], axis=-1, keepdims=True)
        b0 = jnp.sum(b0_acc[...], axis=-1, keepdims=True)
        b1 = jnp.sum(b1_acc[...], axis=-1, keepdims=True)
        a11 = jnp.float32(n_valid)
        scale, shift = _solve_scale_shift(a00, a01, a11, b0, b1)
        scale_ref[0] = jnp.broadcast_to(scale, (1, _LANE))
        shift_ref[0] = jnp.broadcast_to(shift, (1, _LANE))


def _apply_kernel(p_ref, scale_ref, shift_ref, o_ref):
    p = p_ref[...].astype(jnp.float32)                     # (1, Rt, 128)
    o_ref[...] = (p * scale_ref[...] + shift_ref[...]).astype(o_ref.dtype)


def _align_two_pass(p3, t3, m3, n_valid, block_bytes):
    B, rows, _ = p3.shape
    lane_bytes = _LANE * 4
    r_tile = max(_ROW_TILE_GRAN,
                 (block_bytes // lane_bytes) // _ROW_TILE_GRAN * _ROW_TILE_GRAN)
    r_tile = min(r_tile, _round_up(rows, _ROW_TILE_GRAN))
    rows_pad = _round_up(rows, r_tile)
    if rows_pad != rows:
        widths = ((0, 0), (0, rows_pad - rows), (0, 0))
        p3 = jnp.pad(p3, widths)
        t3 = jnp.pad(t3, widths)
        if m3 is not None:
            m3 = jnp.pad(m3, widths)
    n_tiles = rows_pad // r_tile

    tile_spec = pl.BlockSpec((1, r_tile, _LANE), lambda b, i: (b, i, 0))
    stat_spec = pl.BlockSpec((1, 1, _LANE), lambda b, i: (b, 0, 0))
    stat_shape = jax.ShapeDtypeStruct((B, 1, _LANE), jnp.float32)
    itemsize = jnp.dtype(p3.dtype).itemsize
    tile_elems = r_tile * _LANE

    if m3 is not None:
        reduce_kernel = _reduce_masked_kernel
        in_specs = [tile_spec, tile_spec, tile_spec]
        operands = (p3, t3, m3)
        n_acc = 5
        reduce_block_bytes = tile_elems * (2 * itemsize + 1)
    else:
        reduce_kernel = functools.partial(_reduce_nomask_kernel, n_valid=n_valid)
        in_specs = [tile_spec, tile_spec]
        operands = (p3, t3)
        n_acc = 4
        reduce_block_bytes = tile_elems * 2 * itemsize

    # Pass 1: tiled masked reductions -> per-batch scale/shift (lane-broadcast).
    scale_arr, shift_arr = pl.pallas_call(
        reduce_kernel,
        out_shape=(stat_shape, stat_shape),
        grid_spec=pltpu.PrefetchScalarGridSpec(
            num_scalar_prefetch=0,
            grid=(B, n_tiles),
            in_specs=in_specs,
            out_specs=(stat_spec, stat_spec),
            scratch_shapes=[pltpu.VMEM((1, _LANE), jnp.float32)
                            for _ in range(n_acc)],
        ),
        compiler_params=_mosaic_params(reduce_block_bytes,
                                       ("parallel", "arbitrary")),
    )(*operands)

    # Pass 2: elementwise affine apply; fully parallel 2-D grid.
    apply_block_bytes = tile_elems * 2 * itemsize
    out = pl.pallas_call(
        _apply_kernel,
        out_shape=jax.ShapeDtypeStruct((B, rows_pad, _LANE), p3.dtype),
        grid_spec=pltpu.PrefetchScalarGridSpec(
            num_scalar_prefetch=0,
            grid=(B, n_tiles),
            in_specs=[tile_spec, stat_spec, stat_spec],
            out_specs=tile_spec,
        ),
        compiler_params=_mosaic_params(apply_block_bytes,
                                       ("parallel", "parallel")),
    )(p3, scale_arr, shift_arr)
    return out[:, :rows] if rows_pad != rows else out


# --------------------------------------------------------------------------
# Public wrapper (Aligner.forward equivalent).
# --------------------------------------------------------------------------
def aligner_forward(predict, target, mask=None, *,
                    block_bytes=_DEFAULT_BLOCK_BYTES):
    """JAX/Pallas equivalent of Aligner.forward with the canonical
    per-batch-element least-squares scale-&-shift align_fn."""
    assert predict.ndim == 4, "Alignment expects 4 dim predict tensor"
    assert target.ndim == 4, "Alignment expects 4 dim target tensor"
    if mask is not None:
        assert mask.ndim == 4, "Alignment expects 4 dim mask tensor"

    B, C, H, W = predict.shape
    n_valid = C * H * W
    # Lane-dense layout: flatten (C,H,W) and zero-pad to a multiple of 8*128 so
    # the minor dim is exactly 128 lanes and the sublane dim is aligned.
    n_pad = _round_up(n_valid, _SUBLANE * _LANE)
    rows = n_pad // _LANE

    def _prep(x):
        x = x.reshape(B, n_valid)
        if n_pad != n_valid:
            x = jnp.pad(x, ((0, 0), (0, n_pad - n_valid)))
        return x.reshape(B, rows, _LANE)

    p3 = _prep(predict)
    t3 = _prep(target)
    if mask is None:
        m3 = None   # fast path: no mask stream at all; count is static
    else:
        # Keep the mask a 1-byte stream (no f32 materialization); `!= 0`
        # matches torch's mask.bool(); int8 for robust VMEM lowering.
        m3 = _prep((mask != 0).astype(jnp.int8))

    row_bytes = rows * _LANE * 4
    if row_bytes <= block_bytes:
        out3 = _align_fused(p3, t3, m3, n_valid, block_bytes)
    else:
        out3 = _align_two_pass(p3, t3, m3, n_valid, block_bytes)

    out = out3.reshape(B, n_pad)
    if n_pad != n_valid:
        out = out[:, :n_valid]
    return out.reshape(B, C, H, W)


def _reference_forward(predict, target, mask):
    """Pure-JAX reference (per-batch least-squares scale/shift)."""
    p = predict.astype(jnp.float32)
    t = target.astype(jnp.float32)
    m = mask.astype(jnp.float32)
    axes = (1, 2, 3)
    a00 = jnp.sum(m * p * p, axis=axes)
    a01 = jnp.sum(m * p, axis=axes)
    a11 = jnp.sum(m, axis=axes)
    b0 = jnp.sum(m * p * t, axis=axes)
    b1 = jnp.sum(m * t, axis=axes)
    det = a00 * a11 - a01 * a01
    valid = det > 0.0
    safe = jnp.where(valid, det, 1.0)
    s = jnp.where(valid, (a11 * b0 - a01 * b1) / safe, 1.0)[:, None, None, None]
    sh = jnp.where(valid, (a00 * b1 - a01 * b0) / safe, 0.0)[:, None, None, None]
    return (s * p + sh).astype(predict.dtype)


if __name__ == "__main__":
    keys = jax.random.split(jax.random.PRNGKey(0), 6)

    def _check(out, ref):
        assert out.shape == ref.shape and out.dtype == ref.dtype
        assert jnp.allclose(out, ref, rtol=2e-4, atol=2e-4), "mismatch vs reference"

    # Shape 1: small NCHW (CHW = 1024, already lane-aligned) -> fused path.
    B, C, H, W = 2, 4, 16, 16
    target = jax.random.normal(keys[0], (B, C, H, W), dtype=jnp.float32) + 2.0
    predict = 0.5 * target - 1.3 + 0.05 * jax.random.normal(
        keys[1], (B, C, H, W), dtype=jnp.float32)
    mask = jax.random.uniform(keys[2], (B, C, H, W)) > 0.2

    ref = _reference_forward(predict, target, mask)
    ref_nm = _reference_forward(predict, target,
                                jnp.ones_like(predict, dtype=jnp.bool_))
    _check(jax.block_until_ready(aligner_forward(predict, target, mask)), ref)
    _check(jax.block_until_ready(aligner_forward(predict, target, None)), ref_nm)

    # Shape 2: CHW = 4608 (not lane-aligned -> exercises padding); also force
    # the tiled two-pass (v7x-safe) path with a tiny block budget.
    B2, C2, H2, W2 = 2, 1, 32, 144
    target2 = jax.random.normal(keys[3], (B2, C2, H2, W2), dtype=jnp.float32) + 2.0
    predict2 = 0.5 * target2 - 1.3 + 0.05 * jax.random.normal(
        keys[4], (B2, C2, H2, W2), dtype=jnp.float32)
    mask2 = jax.random.uniform(keys[5], (B2, C2, H2, W2)) > 0.2

    ref2 = _reference_forward(predict2, target2, mask2)
    ref2_nm = _reference_forward(predict2, target2,
                                 jnp.ones_like(predict2, dtype=jnp.bool_))
    # fused, several batch rows per block
    _check(jax.block_until_ready(aligner_forward(predict2, target2, mask2)), ref2)
    # fused, one batch row per block
    _check(jax.block_until_ready(
        aligner_forward(predict2, target2, mask2, block_bytes=40 * _LANE * 4)), ref2)
    # tiled two-pass, masked (multi-tile accumulation + row padding)
    _check(jax.block_until_ready(
        aligner_forward(predict2, target2, mask2, block_bytes=8192)), ref2)
    # tiled two-pass, no-mask fast path
    _check(jax.block_until_ready(
        aligner_forward(predict2, target2, None, block_bytes=8192)), ref2_nm)

    print("KERNEL_OK")
</pallas_src>

<mosaic_0001>
module attributes {stable_mosaic.version = 11 : i64} {
  func.func @_fused_masked_kernel(%arg0: i32, %arg1: memref<2x8x128xf32, #tpu.memory_space<vmem>>, %arg2: memref<2x8x128xf32, #tpu.memory_space<vmem>>, %arg3: memref<2x8x128xi8, #tpu.memory_space<vmem>>, %arg4: memref<2x8x128xf32, #tpu.memory_space<vmem>>) attributes {dimension_semantics = [#tpu.dimension_semantics<parallel>], iteration_bounds = array<i64: 1>, scalar_prefetch = 0 : i64, scratch_operands = 0 : i64, tpu.core_type = #tpu.core_type<tc>, window_params = [{transform_indices = @transform_0, window_bounds = array<i64: 2, 8, 128>}, {transform_indices = @transform_1, window_bounds = array<i64: 2, 8, 128>}, {transform_indices = @transform_2, window_bounds = array<i64: 2, 8, 128>}, {transform_indices = @transform_3, window_bounds = array<i64: 2, 8, 128>}]} {
    %c0 = arith.constant 0 : index
    %c0_0 = arith.constant 0 : index
    %c0_1 = arith.constant 0 : index
    %0 = vector.load %arg1[%c0, %c0_0, %c0_1] : memref<2x8x128xf32, #tpu.memory_space<vmem>>, vector<2x8x128xf32>
    %c0_2 = arith.constant 0 : index
    %c0_3 = arith.constant 0 : index
    %c0_4 = arith.constant 0 : index
    %1 = vector.load %arg2[%c0_2, %c0_3, %c0_4] : memref<2x8x128xf32, #tpu.memory_space<vmem>>, vector<2x8x128xf32>
    %c0_5 = arith.constant 0 : index
    %c0_6 = arith.constant 0 : index
    %c0_7 = arith.constant 0 : index
    %2 = vector.load %arg3[%c0_5, %c0_6, %c0_7] : memref<2x8x128xi8, #tpu.memory_space<vmem>>, vector<2x8x128xi8>
    %3 = arith.sitofp %2 : vector<2x8x128xi8> to vector<2x8x128xf32>
    %4 = arith.mulf %3, %0 : vector<2x8x128xf32>
    %5 = arith.mulf %4, %0 : vector<2x8x128xf32>
    %cst = arith.constant dense<0.000000e+00> : vector<2x128xf32>
    %6 = vector.multi_reduction <add>, %5, %cst [1] : vector<2x8x128xf32> to vector<2x128xf32>
    %7 = vector.shape_cast %6 : vector<2x128xf32> to vector<2x1x128xf32>
    %cst_8 = arith.constant dense<0.000000e+00> : vector<2x1xf32>
    %8 = vector.multi_reduction <add>, %7, %cst_8 [2] : vector<2x1x128xf32> to vector<2x1xf32>
    %9 = vector.shape_cast %8 : vector<2x1xf32> to vector<2x1x1xf32>
    %cst_9 = arith.constant dense<0.000000e+00> : vector<2x128xf32>
    %10 = vector.multi_reduction <add>, %4, %cst_9 [1] : vector<2x8x128xf32> to vector<2x128xf32>
    %11 = vector.shape_cast %10 : vector<2x128xf32> to vector<2x1x128xf32>
    %cst_10 = arith.constant dense<0.000000e+00> : vector<2x1xf32>
    %12 = vector.multi_reduction <add>, %11, %cst_10 [2] : vector<2x1x128xf32> to vector<2x1xf32>
    %13 = vector.shape_cast %12 : vector<2x1xf32> to vector<2x1x1xf32>
    %cst_11 = arith.constant dense<0.000000e+00> : vector<2x128xf32>
    %14 = vector.multi_reduction <add>, %3, %cst_11 [1] : vector<2x8x128xf32> to vector<2x128xf32>
    %15 = vector.shape_cast %14 : vector<2x128xf32> to vector<2x1x128xf32>
    %cst_12 = arith.constant dense<0.000000e+00> : vector<2x1xf32>
    %16 = vector.multi_reduction <add>, %15, %cst_12 [2] : vector<2x1x128xf32> to vector<2x1xf32>
    %17 = vector.shape_cast %16 : vector<2x1xf32> to vector<2x1x1xf32>
    %18 = arith.mulf %4, %1 : vector<2x8x128xf32>
    %cst_13 = arith.constant dense<0.000000e+00> : vector<2x128xf32>
    %19 = vector.multi_reduction <add>, %18, %cst_13 [1] : vector<2x8x128xf32> to vector<2x128xf32>
    %20 = vector.shape_cast %19 : vector<2x128xf32> to vector<2x1x128xf32>
    %cst_14 = arith.constant dense<0.000000e+00> : vector<2x1xf32>
    %21 = vector.multi_reduction <add>, %20, %cst_14 [2] : vector<2x1x128xf32> to vector<2x1xf32>
    %22 = vector.shape_cast %21 : vector<2x1xf32> to vector<2x1x1xf32>
    %23 = arith.mulf %3, %1 : vector<2x8x128xf32>
    %cst_15 = arith.constant dense<0.000000e+00> : vector<2x128xf32>
    %24 = vector.multi_reduction <add>, %23, %cst_15 [1] : vector<2x8x128xf32> to vector<2x128xf32>
    %25 = vector.shape_cast %24 : vector<2x128xf32> to vector<2x1x128xf32>
    %cst_16 = arith.constant dense<0.000000e+00> : vector<2x1xf32>
    %26 = vector.multi_reduction <add>, %25, %cst_16 [2] : vector<2x1x128xf32> to vector<2x1xf32>
    %27 = vector.shape_cast %26 : vector<2x1xf32> to vector<2x1x1xf32>
    %28 = arith.mulf %9, %17 : vector<2x1x1xf32>
    %29 = arith.mulf %13, %13 : vector<2x1x1xf32>
    %30 = arith.subf %28, %29 : vector<2x1x1xf32>
    %cst_17 = arith.constant 0.000000e+00 : f32
    %31 = vector.broadcast %cst_17 : f32 to vector<2x1x1xf32>
    %32 = arith.cmpf ogt, %30, %31 : vector<2x1x1xf32>
    %cst_18 = arith.constant 1.000000e+00 : f32
    %33 = vector.broadcast %cst_18 : f32 to vector<2x1x1xf32>
    %34 = arith.select %32, %30, %33 : vector<2x1x1xi1>, vector<2x1x1xf32>
    %cst_19 = arith.constant 1.000000e+00 : f32
    %35 = vector.broadcast %cst_19 : f32 to vector<2x1x1xf32>
    %36 = arith.divf %35, %34 : vector<2x1x1xf32>
    %37 = arith.mulf %17, %22 : vector<2x1x1xf32>
    %38 = arith.mulf %13, %27 : vector<2x1x1xf32>
    %39 = arith.subf %37, %38 : vector<2x1x1xf32>
    %40 = arith.mulf %39, %36 : vector<2x1x1xf32>
    %cst_20 = arith.constant 1.000000e+00 : f32
    %41 = vector.broadcast %cst_20 : f32 to vector<2x1x1xf32>
    %42 = arith.select %32, %40, %41 : vector<2x1x1xi1>, vector<2x1x1xf32>
    %43 = arith.mulf %9, %27 : vector<2x1x1xf32>
    %44 = arith.mulf %13, %22 : vector<2x1x1xf32>
    %45 = arith.subf %43, %44 : vector<2x1x1xf32>
    %46 = arith.mulf %45, %36 : vector<2x1x1xf32>
    %cst_21 = arith.constant 0.000000e+00 : f32
    %47 = vector.broadcast %cst_21 : f32 to vector<2x1x1xf32>
    %48 = arith.select %32, %46, %47 : vector<2x1x1xi1>, vector<2x1x1xf32>
    %49 = vector.broadcast %42 : vector<2x1x1xf32> to vector<2x8x128xf32>
    %50 = arith.mulf %49, %0 : vector<2x8x128xf32>
    %51 = vector.broadcast %48 : vector<2x1x1xf32> to vector<2x8x128xf32>
    %52 = arith.addf %50, %51 : vector<2x8x128xf32>
    %c0_22 = arith.constant 0 : index
    %c0_23 = arith.constant 0 : index
    %c0_24 = arith.constant 0 : index
    %53 = vector.load %arg4[%c0_22, %c0_23, %c0_24] : memref<2x8x128xf32, #tpu.memory_space<vmem>>, vector<2x8x128xf32>
    tpu.vector_store %arg4[%c0_22, %c0_23, %c0_24], %52 {strides = array<i32>} : memref<2x8x128xf32, #tpu.memory_space<vmem>>, vector<2x8x128xf32>,
    return
  }
  func.func @transform_0(%arg0: i32) -> (i32, i32, i32) {
    %c0_i32 = arith.constant 0 : i32
    %c0_i32_0 = arith.constant 0 : i32
    %c0_i32_1 = arith.constant 0 : i32
    return %arg0, %c0_i32, %c0_i32_0 : i32, i32, i32
  }
  func.func @transform_1(%arg0: i32) -> (i32, i32, i32) {
    %c0_i32 = arith.constant 0 : i32
    %c0_i32_0 = arith.constant 0 : i32
    %c0_i32_1 = arith.constant 0 : i32
    return %arg0, %c0_i32, %c0_i32_0 : i32, i32, i32
  }
  func.func @transform_2(%arg0: i32) -> (i32, i32, i32) {
    %c0_i32 = arith.constant 0 : i32
    %c0_i32_0 = arith.constant 0 : i32
    %c0_i32_1 = arith.constant 0 : i32
    return %arg0, %c0_i32, %c0_i32_0 : i32, i32, i32
  }
  func.func @transform_3(%arg0: i32) -> (i32, i32, i32) {
    %c0_i32 = arith.constant 0 : i32
    %c0_i32_0 = arith.constant 0 : i32
    %c0_i32_1 = arith.constant 0 : i32
    return %arg0, %c0_i32, %c0_i32_0 : i32, i32, i32
  }
}

</mosaic_0001>

<llo_original>
// kernel: tpu_custom_call.1
$region0: #{tpu_custom_call.1}
  #allocation0 [shape = 'u32[]', space=smem, size = 0x4, offset = 0x4, fixed_abs, tag = 'smem constant byte address 0x4 - core index']
  #allocation1 [shape = 'u32[144,128]{1,0:T(1,128)}', space=vmem, size = 0x12000, scoped, tag = 'internal scratch']
  %s0 = inlined_call_operand.hbm [shape: f32[2,8,128], index: 0, kind: input, shape index: {}]
  %s1 = inlined_call_operand.hbm [shape: f32[2,8,128], index: 1, kind: input, shape index: {}]
  %s2 = inlined_call_operand.vmem [shape: s8[2,8,128], index: 2, kind: input, shape index: {}]
  %s3 = inlined_call_operand.hbm [shape: f32[2,8,128], index: 3, kind: output, shape index: {}]
  %s4 = sld [smem:[#allocation0]]
  $region30: #{tpu_custom_call.1} parent=0
    _
  %s6 = ssub.s32 1, %s4
  %s7 = scalar_select 0, %s6, %s4
  $region1: #{tpu_custom_call.1} parent=0
    #allocation2 [shape = 'u8[8192]{0}', space=vmem, size = 0x2000, scoped, tag = 'input window, operand 0, single buffered']
    #allocation3 [shape = 's32[1]{0}', space=sflag, size = 0x4, scoped, tag = 'scoped memory for tpu_custom_call.1']
    #allocation4 [shape = 's32[1]{0}', space=sflag, size = 0x4, scoped, tag = 'scoped memory for tpu_custom_call.1']
    #allocation5 [shape = 'u8[8192]{0}', space=vmem, size = 0x2000, scoped, tag = 'input window, operand 1, single buffered']
    #allocation6 [shape = 's32[1]{0}', space=sflag, size = 0x4, scoped, tag = 'scoped memory for tpu_custom_call.1']
    #allocation7 [shape = 'u8[8192]{0}', space=vmem, size = 0x2000, scoped, tag = 'output window, operand 0, single buffered']
    %8 = vsyncpa [#allocation3], 0
    %9 = vsyncpa [#allocation6], 0
    %10 = vsyncpa [#allocation4], 0
    // Predicated region
    $region2: #{tpu_custom_call.1} parent=1 // pred_check
      _
    $region3: #{tpu_custom_call.1} parent=1 // pred_check_branch
      %12 = sbr.rel (0) target = $region5
    $region4: #{tpu_custom_call.1} parent=1 // pred_region
      %s14 = ssub.s32 256, 256
      %15 = vsyncadd [#allocation3], %s14
      %s16 = sshll.u32 [#allocation2], 4
      %s17 = int_to_ptr.vmem [resolvable:$true] %s16
      %22 = dma.hbm_to_vmem [thread:$0]  %s0, 256, %s17, [#allocation3], 128, 128, 8
    $region5: #{tpu_custom_call.1} parent=1 // pred_fallthru
      _
    // Predicated region
    $region6: #{tpu_custom_call.1} parent=1 // pred_check
      _
    $region7: #{tpu_custom_call.1} parent=1 // pred_check_branch
      %24 = sbr.rel (0) target = $region9
    $region8: #{tpu_custom_call.1} parent=1 // pred_region
      %s26 = ssub.s32 256, 256
      %27 = vsyncadd [#allocation6], %s26
      %s28 = sshll.u32 [#allocation5], 4
      %s29 = int_to_ptr.vmem [resolvable:$true] %s28
      %34 = dma.hbm_to_vmem [thread:$0]  %s1, 256, %s29, [#allocation6], 128, 128, 8
    $region9: #{tpu_custom_call.1} parent=1 // pred_fallthru
      _
    // Predicated region
    $region10: #{tpu_custom_call.1} parent=1 // pred_check
      _
    $region11: #{tpu_custom_call.1} parent=1 // pred_check_branch
      %36 = sbr.rel (0) target = $region13
    $region12: #{tpu_custom_call.1} parent=1 // pred_region
      _
    $region13: #{tpu_custom_call.1} parent=1 // pred_fallthru
      _
    // Predicated region
    $region14: #{tpu_custom_call.1} parent=1 // pred_check
      _
    $region15: #{tpu_custom_call.1} parent=1 // pred_check_branch
      %38 = sbr.rel (0) target = $region17
    $region16: #{tpu_custom_call.1} parent=1 // pred_region
      %39 = dma.done [#allocation3], 256
    $region17: #{tpu_custom_call.1} parent=1 // pred_fallthru
      _
    // Predicated region
    $region18: #{tpu_custom_call.1} parent=1 // pred_check
      _
    $region19: #{tpu_custom_call.1} parent=1 // pred_check_branch
      %41 = sbr.rel (0) target = $region21
    $region20: #{tpu_custom_call.1} parent=1 // pred_region
      %42 = dma.done [#allocation6], 256
    $region21: #{tpu_custom_call.1} parent=1 // pred_fallthru
      _
    %v43 = vld [vmem:[#allocation2] sm:$0xff]
    %v44 = vld [vmem:[#allocation2 + $0x8] sm:$0xff]
    %v45 = vld [vmem:[#allocation5] sm:$0xff]
    %v46 = vld [vmem:[#allocation5 + $0x8] sm:$0xff]
    %v47 = vld [vmem:[%s2] sm:$0x3]
    %v48 = vld [vmem:[%s2 + $0x2] sm:$0x3]
    %v49 = vunpack.c.0.s8 %v47
    %v50 = vunpack.c.0.s8 %v48
    %v51 = vcvt.s32.f32 %v49
    %v52 = vcvt.s32.f32 %v50
    %v53 = vmul.f32 %v51, %v43
    %v54 = vmul.f32 %v52, %v44
    %v55 = vmul.f32 %v53, %v43
    %v56 = vmul.f32 %v54, %v44
    %v57 = vrot.slane %v55, 4
    %v58 = vadd.f32 %v55, %v57
    %v59 = vrot.slane %v58, 2
    %v60 = vadd.f32 %v58, %v59
    %v61 = vrot.slane %v60, 1
    %v62 = vadd.f32 %v60, %v61
    %v63 = vrot.slane %v56, 4
    %v64 = vadd.f32 %v56, %v63
    %v65 = vrot.slane %v64, 2
    %v66 = vadd.f32 %v64, %v65
    %v67 = vrot.slane %v66, 1
    %v68 = vadd.f32 %v66, %v67
    %69 = vadd.xlane.f32.xlu0 %v62
    %v70 = vpop.xlane.xlu0 %69
    %71 = vadd.xlane.f32.xlu0 %v68
    %v72 = vpop.xlane.xlu0 %71
    %v73 = vrot.slane %v53, 4
    %v74 = vadd.f32 %v53, %v73
    %v75 = vrot.slane %v74, 2
    %v76 = vadd.f32 %v74, %v75
    %v77 = vrot.slane %v76, 1
    %v78 = vadd.f32 %v76, %v77
    %v79 = vrot.slane %v54, 4
    %v80 = vadd.f32 %v54, %v79
    %v81 = vrot.slane %v80, 2
    %v82 = vadd.f32 %v80, %v81
    %v83 = vrot.slane %v82, 1
    %v84 = vadd.f32 %v82, %v83
    %85 = vadd.xlane.f32.xlu0 %v78
    %v86 = vpop.xlane.xlu0 %85
    %87 = vadd.xlane.f32.xlu0 %v84
    %v88 = vpop.xlane.xlu0 %87
    %v89 = vrot.slane %v51, 4
    %v90 = vadd.f32 %v51, %v89
    %v91 = vrot.slane %v90, 2
    %v92 = vadd.f32 %v90, %v91
    %v93 = vrot.slane %v92, 1
    %v94 = vadd.f32 %v92, %v93
    %v95 = vrot.slane %v52, 4
    %v96 = vadd.f32 %v52, %v95
    %v97 = vrot.slane %v96, 2
    %v98 = vadd.f32 %v96, %v97
    %v99 = vrot.slane %v98, 1
    %v100 = vadd.f32 %v98, %v99
    %101 = vadd.xlane.f32.xlu0 %v94
    %v102 = vpop.xlane.xlu0 %101
    %103 = vadd.xlane.f32.xlu0 %v100
    %v104 = vpop.xlane.xlu0 %103
    %v105 = vmul.f32 %v53, %v45
    %v106 = vmul.f32 %v54, %v46
    %v107 = vrot.slane %v105, 4
    %v108 = vadd.f32 %v105, %v107
    %v109 = vrot.slane %v108, 2
    %v110 = vadd.f32 %v108, %v109
    %v111 = vrot.slane %v110, 1
    %v112 = vadd.f32 %v110, %v111
    %v113 = vrot.slane %v106, 4
    %v114 = vadd.f32 %v106, %v113
    %v115 = vrot.slane %v114, 2
    %v116 = vadd.f32 %v114, %v115
    %v117 = vrot.slane %v116, 1
    %v118 = vadd.f32 %v116, %v117
    %119 = vadd.xlane.f32.xlu0 %v112
    %v120 = vpop.xlane.xlu0 %119
    %121 = vadd.xlane.f32.xlu0 %v118
    %v122 = vpop.xlane.xlu0 %121
    %v123 = vmul.f32 %v51, %v45
    %v124 = vmul.f32 %v52, %v46
    %v125 = vrot.slane %v123, 4
    %v126 = vadd.f32 %v123, %v125
    %v127 = vrot.slane %v126, 2
    %v128 = vadd.f32 %v126, %v127
    %v129 = vrot.slane %v128, 1
    %v130 = vadd.f32 %v128, %v129
    %v131 = vrot.slane %v124, 4
    %v132 = vadd.f32 %v124, %v131
    %v133 = vrot.slane %v132, 2
    %v134 = vadd.f32 %v132, %v133
    %v135 = vrot.slane %v134, 1
    %v136 = vadd.f32 %v134, %v135
    %137 = vadd.xlane.f32.xlu0 %v130
    %v138 = vpop.xlane.xlu0 %137
    %139 = vadd.xlane.f32.xlu0 %v136
    %v140 = vpop.xlane.xlu0 %139
    %v141 = vmul.f32 %v70, %v102
    %v142 = vmul.f32 %v72, %v104
    %v143 = vmul.f32 %v86, %v86
    %v144 = vmul.f32 %v88, %v88
    %v145 = vsub.f32 %v141, %v143
    %v146 = vsub.f32 %v142, %v144
    %vm147 = vcmp.gt.f32.partialorder %v145, 0.0
    %vm148 = vcmp.gt.f32.partialorder %v146, 0.0
    %v149 = vsel %vm147, %v145, 1.0
    %v150 = vsel %vm148, %v146, 1.0
    %v151 = vrcp.pop %v149
    %v152 = vmul.f32 1.0, %v151
    %v153 = vrcp.pop %v150
    %v154 = vmul.f32 1.0, %v153
    %v155 = vmul.f32 %v102, %v120
    %v156 = vmul.f32 %v104, %v122
    %v157 = vmul.f32 %v86, %v138
    %v158 = vmul.f32 %v88, %v140
    %v159 = vsub.f32 %v155, %v157
    %v160 = vsub.f32 %v156, %v158
    %v161 = vmul.f32 %v159, %v152
    %v162 = vmul.f32 %v160, %v154
    %v163 = vsel %vm147, %v161, 1.0
    %v164 = vsel %vm148, %v162, 1.0
    %v165 = vmul.f32 %v70, %v138
    %v166 = vmul.f32 %v72, %v140
    %v167 = vmul.f32 %v86, %v120
    %v168 = vmul.f32 %v88, %v122
    %v169 = vsub.f32 %v165, %v167
    %v170 = vsub.f32 %v166, %v168
    %v171 = vmul.f32 %v169, %v152
    %v172 = vmul.f32 %v170, %v154
    %v173 = vsel %vm147, %v171, 0.0
    %v174 = vsel %vm148, %v172, 0.0
    %v175 = vmul.f32 %v163, %v43
    %v176 = vmul.f32 %v164, %v44
    %v177 = vadd.f32 %v175, %v173
    %v178 = vadd.f32 %v176, %v174
    %179 = vst [vmem:[#allocation7] sm:$0xff] %v177
    %180 = vst [vmem:[#allocation7 + $0x8] sm:$0xff] %v178
    // Predicated region
    $region22: #{tpu_custom_call.1} parent=1 // pred_check
      _
    $region23: #{tpu_custom_call.1} parent=1 // pred_check_branch
      %182 = sbr.rel (0) target = $region25
    $region24: #{tpu_custom_call.1} parent=1 // pred_region
      %s184 = ssub.s32 256, 256
      %185 = vsyncadd [#allocation4], %s184
      %s186 = sshll.u32 [#allocation7], 4
      %s187 = int_to_ptr.vmem [resolvable:$true] %s186
      %192 = dma.vmem_to_hbm [thread:$0]  %s187, 256, %s3, [#allocation4], 128, 128, 8
    $region25: #{tpu_custom_call.1} parent=1 // pred_fallthru
      _
    // Predicated region
    $region26: #{tpu_custom_call.1} parent=1 // pred_check
      _
    $region27: #{tpu_custom_call.1} parent=1 // pred_check_branch
      %194 = sbr.rel (0) target = $region29
    $region28: #{tpu_custom_call.1} parent=1 // pred_region
      %195 = dma.done [#allocation4], 256
    $region29: #{tpu_custom_call.1} parent=1 // pred_fallthru
      _
    %196 = vsyncpa [#allocation3], 1
    %197 = vsyncpa [#allocation6], 1
    %198 = vsyncpa [#allocation4], 1

</llo_original>
